<compile_context>
chip_gen: v6e
topology: v6e:2x2x1
jax: 0.10.0
libtpu: 0.0.40
codegen_flags: <defaults>
</compile_context>

<pallas_src>
import functools
import math

import jax
import jax.numpy as jnp
from jax.experimental import pallas as pl
from jax.experimental.pallas import tpu as pltpu


# ----------------------------------------------------------------------------
# Fused QKV projection: qkv[b, t, :] = x[b, t, :] @ [Wq*scale | Wk | Wv]
# ----------------------------------------------------------------------------
def _qkv_projection_kernel(x_ref, w_ref, qkv_ref):
    qkv_ref[0] = jnp.dot(
        x_ref[0], w_ref[...], preferred_element_type=jnp.float32
    ).astype(qkv_ref.dtype)


# ----------------------------------------------------------------------------
# Flash-attention over a flattened lower-triangular (qi, ki) grid.
# ----------------------------------------------------------------------------
def _flash_causal_attention_kernel(
    qi_map_ref, ki_map_ref,            # scalar-prefetch lookup tables (SMEM)
    q_ref, k_ref, v_ref,               # pre-projected bf16 Q / K / V tiles
    o_ref,                             # output tile
    m_scr, l_scr, acc_scr,             # VMEM scratch (running stats + acc)
    *, block_q, block_kv,
):
    p = pl.program_id(1)
    qi = qi_map_ref[p]
    ki = ki_map_ref[p]

    # First KV step for this Q block: reset the running softmax statistics.
    @pl.when(ki == 0)
    def _init():
        m_scr[...] = jnp.full(m_scr.shape, -jnp.inf, dtype=jnp.float32)
        l_scr[...] = jnp.zeros(l_scr.shape, dtype=jnp.float32)
        acc_scr[...] = jnp.zeros(acc_scr.shape, dtype=jnp.float32)

    q = q_ref[0]                                             # (bq, d_out_p) bf16
    k = k_ref[0]                                             # (bkv, d_out_p) bf16
    v = v_ref[0]                                             # (bkv, d_out_p) bf16

    # scores = q @ k^T without materializing k.T (contract the last dims).
    # The 1/sqrt(d_out) scale is already folded into q (via W_query).
    s = jax.lax.dot_general(
        q, k, (((1,), (1,)), ((), ())),
        preferred_element_type=jnp.float32)                  # (bq, bkv) f32

    def online_softmax_update(s_blk):
        m_prev = m_scr[...]
        m_new = jnp.maximum(m_prev, s_blk.max(axis=-1, keepdims=True))
        alpha = jnp.exp(m_prev - m_new)
        pmat = jnp.exp(s_blk - m_new)
        l_scr[...] = alpha * l_scr[...] + pmat.sum(axis=-1, keepdims=True)
        acc_scr[...] = alpha * acc_scr[...] + jnp.dot(
            pmat.astype(jnp.bfloat16), v, preferred_element_type=jnp.float32)
        m_scr[...] = m_new

    @pl.when(ki < qi)
    def _off_diagonal():
        online_softmax_update(s)

    @pl.when(ki == qi)
    def _diagonal():
        # Causal mask is only needed on the diagonal tile; with square tiles
        # the global condition (col > row) reduces to the local one.  Every
        # row keeps at least its own diagonal element, so m_new stays finite.
        row = jax.lax.broadcasted_iota(jnp.int32, (block_q, block_kv), 0)
        col = jax.lax.broadcasted_iota(jnp.int32, (block_q, block_kv), 1)
        online_softmax_update(jnp.where(col > row, -jnp.inf, s))

        # The diagonal tile is the last visible KV block for this Q block:
        # finalize and store (output block stays resident across the ki run).
        inv_l = pl.reciprocal(l_scr[...], approx=True)
        o_ref[0] = (acc_scr[...] * inv_l).astype(o_ref.dtype)

    # TODO(synk): training-mode dropout on the attention weights is not
    # implemented (module evaluated with eval / identity-dropout semantics).


def causal_attention(x, w_query, w_key, w_value, *,
                     block_q=None, block_kv=None, block_proj=None):
    """x: (B, T, d_in); w_*: (d_in, d_out). Returns (B, T, d_out)."""
    B, T, d_in = x.shape
    d_out = w_query.shape[1]
    scale = 1.0 / math.sqrt(d_out)      # keys.shape[-1] ** 0.5 in the module
    out_dtype = x.dtype

    # Lane-dense output: zero-pad d_out up to a multiple of 128. Padding does
    # not change the math (zero q/k columns contribute nothing to scores, zero
    # v columns are sliced back off below).
    d_out_p = ((d_out + 127) // 128) * 128
    pad = d_out_p - d_out
    if pad:
        w_query = jnp.pad(w_query, ((0, 0), (0, pad)))
        w_key = jnp.pad(w_key, ((0, 0), (0, pad)))
        w_value = jnp.pad(w_value, ((0, 0), (0, pad)))

    # Fold the softmax 1/sqrt(d_out) scale into W_query (one-time, on the
    # weights) and fuse the three projections into one (d_in, 3*d_out_p)
    # matrix so a single MXU pass produces Q, K and V (N = 3*d_out_p).
    w_qkv = jnp.concatenate(
        [w_query * scale, w_key, w_value], axis=1).astype(jnp.bfloat16)
    x_bf = x.astype(jnp.bfloat16)

    if block_q is None:
        block_q = min(T, 256)
    if block_kv is None:
        block_kv = block_q
    assert block_q == block_kv, "causal tile-skipping assumes square tiles"
    assert T % block_q == 0, "T must be divisible by the Q/KV tile size"
    assert block_q == T or block_q % 8 == 0, "tile must be sublane aligned"

    if block_proj is None:
        block_proj = min(T, 256)
    assert T % block_proj == 0

    n_q = T // block_q

    # ---- 1) Fused QKV projection (one pass over x, no redundant MACs later).
    qkv = pl.pallas_call(
        _qkv_projection_kernel,
        out_shape=jax.ShapeDtypeStruct((B, T, 3 * d_out_p), jnp.bfloat16),
        grid=(B, T // block_proj),
        in_specs=[
            pl.BlockSpec((1, block_proj, d_in), lambda b, t: (b, t, 0)),
            pl.BlockSpec((d_in, 3 * d_out_p), lambda b, t: (0, 0)),
        ],
        out_specs=pl.BlockSpec((1, block_proj, 3 * d_out_p),
                               lambda b, t: (b, t, 0)),
        compiler_params=pltpu.CompilerParams(
            dimension_semantics=("parallel", "parallel"),
            vmem_limit_bytes=32 * 1024 * 1024),
    )(x_bf, w_qkv)

    # ---- 2) Flash attention over only the lower-triangular (qi, ki) pairs.
    # Scalar-prefetch lookup tables map the flat pair index -> (qi, ki); ki
    # runs 0..qi for each qi so the output block stays resident across its run
    # and the diagonal tile is always the last step for that Q block.
    qi_idx, ki_idx = [], []
    for q_blk in range(n_q):
        for k_blk in range(q_blk + 1):
            qi_idx.append(q_blk)
            ki_idx.append(k_blk)
    qi_map = jnp.asarray(qi_idx, dtype=jnp.int32)
    ki_map = jnp.asarray(ki_idx, dtype=jnp.int32)
    n_pairs = len(qi_idx)

    kernel = functools.partial(
        _flash_causal_attention_kernel, block_q=block_q, block_kv=block_kv)

    grid_spec = pltpu.PrefetchScalarGridSpec(
        num_scalar_prefetch=2,
        grid=(B, n_pairs),
        in_specs=[
            # Q / K / V tiles are lane-blocks 0 / 1 / 2 of the fused qkv array.
            pl.BlockSpec((1, block_q, d_out_p),
                         lambda b, p, qm, km: (b, qm[p], 0)),
            pl.BlockSpec((1, block_kv, d_out_p),
                         lambda b, p, qm, km: (b, km[p], 1)),
            pl.BlockSpec((1, block_kv, d_out_p),
                         lambda b, p, qm, km: (b, km[p], 2)),
        ],
        out_specs=pl.BlockSpec((1, block_q, d_out_p),
                               lambda b, p, qm, km: (b, qm[p], 0)),
        scratch_shapes=[
            pltpu.VMEM((block_q, 1), jnp.float32),          # running max
            pltpu.VMEM((block_q, 1), jnp.float32),          # running denom
            pltpu.VMEM((block_q, d_out_p), jnp.float32),    # output accumulator
        ],
    )

    out_padded = pl.pallas_call(
        kernel,
        out_shape=jax.ShapeDtypeStruct((B, T, d_out_p), out_dtype),
        grid_spec=grid_spec,
        compiler_params=pltpu.CompilerParams(
            # Only the batch axis is sharded across TensorCores; the pair axis
            # carries the accumulator and already has uniform per-step work.
            dimension_semantics=("parallel", "arbitrary"),
            vmem_limit_bytes=32 * 1024 * 1024),
    )(qi_map, ki_map, qkv, qkv, qkv)

    return out_padded[..., :d_out] if pad else out_padded


def causal_attention_ref(x, w_query, w_key, w_value):
    """Pure-JAX f32 reference matching the PyTorch forward (dropout=identity)."""
    q = x @ w_query
    k = x @ w_key
    v = x @ w_value
    scores = jnp.einsum("btd,bsd->bts", q, k)
    T = x.shape[1]
    mask = jnp.triu(jnp.ones((T, T), dtype=bool), k=1)
    scores = jnp.where(mask[None, :, :], -jnp.inf, scores)
    weights = jax.nn.softmax(scores / math.sqrt(k.shape[-1]), axis=-1)
    return weights @ v


def _make_inputs(key, B, T, d_in, d_out):
    kx, kq, kk, kv = jax.random.split(key, 4)
    x = jax.random.normal(kx, (B, T, d_in), dtype=jnp.float32)
    # Deterministic "Linear(bias=False)" weights, stored as (d_in, d_out).
    s = 1.0 / math.sqrt(d_in)
    w_query = jax.random.uniform(kq, (d_in, d_out), jnp.float32, -s, s)
    w_key = jax.random.uniform(kk, (d_in, d_out), jnp.float32, -s, s)
    w_value = jax.random.uniform(kv, (d_in, d_out), jnp.float32, -s, s)
    return x, w_query, w_key, w_value


if __name__ == "__main__":
    key = jax.random.PRNGKey(0)
    k1, k2 = jax.random.split(key)

    # bf16 MXU operands + approx reciprocal -> relaxed tolerance vs f32 ref.
    ATOL = RTOL = 5e-2

    # 1) Small, module-consistent shapes: batch=2, seq=8, d_in=32, d_out=16.
    B, T, d_in, d_out = 2, 8, 32, 16
    x, wq, wk, wv = _make_inputs(k1, B, T, d_in, d_out)
    out = jax.block_until_ready(causal_attention(x, wq, wk, wv))
    ref = causal_attention_ref(x, wq, wk, wv)
    assert out.shape == (B, T, d_out)
    assert jnp.allclose(out, ref, atol=ATOL, rtol=RTOL), "mismatch (small case)"

    # 2) Multi-tile case exercising the fused QKV projection, the triangular
    #    pair grid (3 steps per batch element) and the flash accumulation.
    B2, T2, d_in2, d_out2 = 2, 256, 128, 64
    x2, wq2, wk2, wv2 = _make_inputs(k2, B2, T2, d_in2, d_out2)
    out2 = jax.block_until_ready(
        causal_attention(x2, wq2, wk2, wv2, block_q=128, block_kv=128))
    ref2 = causal_attention_ref(x2, wq2, wk2, wv2)
    assert out2.shape == (B2, T2, d_out2)
    assert jnp.allclose(out2, ref2, atol=ATOL, rtol=RTOL), "mismatch (tiled case)"

    print("KERNEL_OK")
</pallas_src>

<mosaic_0001>
module attributes {stable_mosaic.version = 11 : i64} {
  func.func @_qkv_projection_kernel(%arg0: i32, %arg1: i32, %arg2: memref<1x8x32xbf16, #tpu.memory_space<vmem>>, %arg3: memref<32x384xbf16, #tpu.memory_space<vmem>>, %arg4: memref<1x8x384xbf16, #tpu.memory_space<vmem>>) attributes {dimension_semantics = [#tpu.dimension_semantics<parallel>, #tpu.dimension_semantics<parallel>], iteration_bounds = array<i64: 2, 1>, scalar_prefetch = 0 : i64, scratch_operands = 0 : i64, tpu.core_type = #tpu.core_type<tc>, window_params = [{transform_indices = @transform_0, window_bounds = array<i64: 1, 8, 32>}, {pipeline_mode = #tpu.pipeline_mode<synchronous>, transform_indices = @transform_1, window_bounds = array<i64: 32, 384>}, {transform_indices = @transform_2, window_bounds = array<i64: 1, 8, 384>}]} {
    %c0 = arith.constant 0 : index
    %c0_0 = arith.constant 0 : index
    %c0_1 = arith.constant 0 : index
    %0 = vector.load %arg2[%c0, %c0_0, %c0_1] : memref<1x8x32xbf16, #tpu.memory_space<vmem>>, vector<1x8x32xbf16>
    %1 = vector.shape_cast %0 : vector<1x8x32xbf16> to vector<8x32xbf16>
    %c0_2 = arith.constant 0 : index
    %c0_3 = arith.constant 0 : index
    %2 = vector.load %arg3[%c0_2, %c0_3] : memref<32x384xbf16, #tpu.memory_space<vmem>>, vector<32x384xbf16>
    %cst = arith.constant dense<0.000000e+00> : vector<8x384xf32>
    %3 = tpu.matmul %1, %2, %cst {dimension_numbers = #tpu.dot_dimension_numbers<[1], [0], [0], [1], [0, 0, 1, 1], [], []>} : vector<8x32xbf16>, vector<32x384xbf16>, vector<8x384xf32> -> vector<8x384xf32>
    %4 = arith.truncf %3 : vector<8x384xf32> to vector<8x384xbf16>
    %c0_4 = arith.constant 0 : index
    %c0_5 = arith.constant 0 : index
    %c0_6 = arith.constant 0 : index
    %5 = vector.load %arg4[%c0_4, %c0_5, %c0_6] : memref<1x8x384xbf16, #tpu.memory_space<vmem>>, vector<1x8x384xbf16>
    %6 = vector.shape_cast %5 : vector<1x8x384xbf16> to vector<8x384xbf16>
    %7 = vector.shape_cast %4 : vector<8x384xbf16> to vector<1x8x384xbf16>
    tpu.vector_store %arg4[%c0_4, %c0_5, %c0_6], %7 {strides = array<i32>} : memref<1x8x384xbf16, #tpu.memory_space<vmem>>, vector<1x8x384xbf16>,
    return
  }
  func.func @transform_0(%arg0: i32, %arg1: i32) -> (i32, i32, i32) {
    %c0_i32 = arith.constant 0 : i32
    %c0_i32_0 = arith.constant 0 : i32
    return %arg0, %arg1, %c0_i32 : i32, i32, i32
  }
  func.func @transform_1(%arg0: i32, %arg1: i32) -> (i32, i32) {
    %c0_i32 = arith.constant 0 : i32
    %c0_i32_0 = arith.constant 0 : i32
    %c0_i32_1 = arith.constant 0 : i32
    return %c0_i32, %c0_i32_0 : i32, i32
  }
  func.func @transform_2(%arg0: i32, %arg1: i32) -> (i32, i32, i32) {
    %c0_i32 = arith.constant 0 : i32
    %c0_i32_0 = arith.constant 0 : i32
    return %arg0, %arg1, %c0_i32 : i32, i32, i32
  }
}

</mosaic_0001>

<llo_original>
// kernel: tpu_custom_call.1
$region0: #{tpu_custom_call.1}
  #allocation0 [shape = 'u32[]', space=smem, size = 0x4, offset = 0x4, fixed_abs, tag = 'smem constant byte address 0x4 - core index']
  #allocation1 [shape = 'u32[144,128]{1,0:T(1,128)}', space=vmem, size = 0x12000, scoped, tag = 'internal scratch']
  %s0 = inlined_call_operand.hbm [shape: bf16[2,8,32], index: 0, kind: input, shape index: {}]
  %s1 = inlined_call_operand.hbm [shape: bf16[32,384], index: 1, kind: input, shape index: {}]
  %s2 = inlined_call_operand.hbm [shape: bf16[2,8,384], index: 2, kind: output, shape index: {}]
  %s3 = sld [smem:[#allocation0]]
  $region49: #{tpu_custom_call.1} parent=0
    _
  %s5 = ssub.s32 1, %s3
  %s6 = scalar_select 0, %s5, %s3
  $region1: #{tpu_custom_call.1} parent=0
    #allocation2 [shape = 'u8[4096]{0}', space=vmem, size = 0x1000, scoped, tag = 'input window, operand 0']
    #allocation3 [shape = 's32[2]{0}', space=sflag, size = 0x8, scoped, tag = 'scoped memory for tpu_custom_call.1']
    #allocation4 [shape = 's32[2]{0}', space=sflag, size = 0x8, scoped, tag = 'scoped memory for tpu_custom_call.1']
    #allocation5 [shape = 'u8[24576]{0}', space=vmem, size = 0x6000, scoped, tag = 'input window, operand 1, single buffered']
    #allocation6 [shape = 's32[1]{0}', space=sflag, size = 0x4, scoped, tag = 'scoped memory for tpu_custom_call.1']
    #allocation7 [shape = 'u8[12288]{0}', space=vmem, size = 0x3000, scoped, tag = 'output window, operand 0']
    %7 = vsyncpa [#allocation3], 0
    %s8 = scalar_lea.sflag [#allocation3], 1
    %9 = vsyncpa %s8, 0
    %10 = vsyncpa [#allocation6], 0
    %11 = vsyncpa [#allocation4], 0
    %s12 = scalar_lea.sflag [#allocation4], 1
    %13 = vsyncpa %s12, 0
    loop: start=0, step=1, limit=4
    $region2: #{tpu_custom_call.1} parent=1 // loop_pre_header
      _
    $region3: #{tpu_custom_call.1} parent=1 // loop_header
      %s15 = sphi 0, %s19
      %p16 = scmp.ge.s32.totalorder %s15, 4
      %s22 = sphi 0, %s34
      %s23 = sphi 0, %s30
      %s24 = sphi 0, %s22
      %s25 = sphi 0, %s23
      %s26 = sphi 0, %s24
      %s27 = sphi 0, %s25
      %s39 = sphi 0, %s41
      %s42 = sphi 0, %s39
      %s43 = sphi 0, %s42
      %s59 = sphi 0, %s43
      %s63 = sphi 0, %s63
      %s65 = sphi 0, %s63
      %s66 = sphi 0, %s65
      %s80 = sphi 0, %s66
      %s88 = sphi 0, %s90
      %s91 = sphi 0, %s88
      %s92 = sphi 0, %s91
      %s108 = sphi 0, %s92
    $region4: #{tpu_custom_call.1} parent=1 // loop_header_branch
      %18 = sbr.rel (%p16) target = $region8
    $region5: #{tpu_custom_call.1} parent=1 // loop_body
      %s20 = ssub.s32 %s15, 1
      %s21 = ssub.s32 %s15, 2
      %s28 = sadd.s32 1, %s23
      %p29 = scmp.ge.s32.totalorder %s28, 1
      %s30 = scalar_select %p29, 0, %s28
      %s31 = sadd.s32 1, %s22
      %s32 = scalar_select %p29, %s31, %s22
      %p33 = scmp.ge.s32.totalorder %s32, 2
      %s34 = scalar_select %p33, 0, %s32
      %s35 = ssub.s32 %s22, %s34
      %s36 = ssub.s32 %s23, %s30
      %s37 = sor.u32 %s35, %s36
      %p38 = scmp.eq.s32.totalorder %s37, 0
      %s40 = sadd.s32 %s39, 1
      %s41 = scalar_select %p38, %s39, %s40
      %p44 = pneg %p38
      %p45 = scmp.eq.s32.totalorder %s15, 1
      %p46 = por %p44, %p45
      %p47 = scmp.ne.s32.totalorder %s39, %s42
      %p48 = scmp.eq.s32.totalorder %s15, 0
      %p49 = por %p47, %p48
      %p50 = scmp.ne.s32.totalorder %s39, %s42
      %p51 = scmp.eq.s32.totalorder %s20, 1
      %p52 = por %p50, %p51
      %p53 = scmp.ne.s32.totalorder %s42, %s43
      %p54 = scmp.eq.s32.totalorder %s20, 0
      %p55 = por %p53, %p54
      %p56 = scmp.ne.s32.totalorder %s42, %s43
      %p57 = scmp.eq.s32.totalorder %s21, 1
      %p58 = por %p56, %p57
      %p60 = scmp.ne.s32.totalorder %s43, %s59
      %p61 = scmp.eq.s32.totalorder %s21, 0
      %p62 = por %p60, %p61
      %s64 = sadd.s32 %s63, 1
      %p67 = scmp.eq.s32.totalorder %s15, 1
      %p68 = scmp.ne.s32.totalorder %s63, %s65
      %p69 = scmp.eq.s32.totalorder %s15, 0
      %p70 = por %p68, %p69
      %p71 = scmp.ne.s32.totalorder %s63, %s65
      %p72 = scmp.eq.s32.totalorder %s20, 1
      %p73 = por %p71, %p72
      %p74 = scmp.ne.s32.totalorder %s65, %s66
      %p75 = scmp.eq.s32.totalorder %s20, 0
      %p76 = por %p74, %p75
      %p77 = scmp.ne.s32.totalorder %s65, %s66
      %p78 = scmp.eq.s32.totalorder %s21, 1
      %p79 = por %p77, %p78
      %p81 = scmp.ne.s32.totalorder %s66, %s80
      %p82 = scmp.eq.s32.totalorder %s21, 0
      %p83 = por %p81, %p82
      %s84 = ssub.s32 %s22, %s34
      %s85 = ssub.s32 %s23, %s30
      %s86 = sor.u32 %s84, %s85
      %p87 = scmp.eq.s32.totalorder %s86, 0
      %s89 = sadd.s32 %s88, 1
      %s90 = scalar_select %p87, %s88, %s89
      %p93 = pneg %p87
      %p94 = scmp.eq.s32.totalorder %s15, 1
      %p95 = por %p93, %p94
      %p96 = scmp.ne.s32.totalorder %s88, %s91
      %p97 = scmp.eq.s32.totalorder %s15, 0
      %p98 = por %p96, %p97
      %p99 = scmp.ne.s32.totalorder %s88, %s91
      %p100 = scmp.eq.s32.totalorder %s20, 1
      %p101 = por %p99, %p100
      %p102 = scmp.ne.s32.totalorder %s91, %s92
      %p103 = scmp.eq.s32.totalorder %s20, 0
      %p104 = por %p102, %p103
      %p105 = scmp.ne.s32.totalorder %s91, %s92
      %p106 = scmp.eq.s32.totalorder %s21, 1
      %p107 = por %p105, %p106
      %p109 = scmp.ne.s32.totalorder %s92, %s108
      %p110 = scmp.eq.s32.totalorder %s21, 0
      %p111 = por %p109, %p110
      %p112 = scmp.le.s32.totalorder 1, %s15
      %p113 = scmp.lt.s32.totalorder %s15, 3
      %p114 = pnand %p112, %p113
      %p115 = pneg %p114
      // Predicated region
      $region9: #{tpu_custom_call.1} parent=5 // pred_check
        _
      $region10: #{tpu_custom_call.1} parent=5 // pred_check_branch
        %117 = sbr.rel (%p114) target = $region12
      $region11: #{tpu_custom_call.1} parent=5 // pred_region
        %s118 = ssub.s32 %s15, 1
        // Predicated region
        $region13: #{tpu_custom_call.1} parent=11 // pred_check
          %p119 = pneg %p76
        $region14: #{tpu_custom_call.1} parent=11 // pred_check_branch
          %121 = sbr.rel (%p119) target = $region16
        $region15: #{tpu_custom_call.1} parent=11 // pred_region
          %s123 = ssub.s32 768, 768
          %124 = vsyncadd [#allocation6], %s123
          %s125 = sshll.u32 [#allocation5], 4
          %s126 = int_to_ptr.vmem [resolvable:$true] %s125
          %131 = dma.hbm_to_vmem [thread:$0]  %s1, 768, %s126, [#allocation6], 192, 192, 12
        $region16: #{tpu_custom_call.1} parent=11 // pred_fallthru
          _
      $region12: #{tpu_custom_call.1} parent=5 // pred_fallthru
        _
      %p132 = scmp.lt.s32.totalorder %s15, 2
      // Predicated region
      $region17: #{tpu_custom_call.1} parent=5 // pred_check
        %p133 = pneg %p132
      $region18: #{tpu_custom_call.1} parent=5 // pred_check_branch
        %135 = sbr.rel (%p133) target = $region20
      $region19: #{tpu_custom_call.1} parent=5 // pred_region
        // Predicated region
        $region21: #{tpu_custom_call.1} parent=19 // pred_check
          %p136 = pneg %p49
        $region22: #{tpu_custom_call.1} parent=19 // pred_check_branch
          %138 = sbr.rel (%p136) target = $region24
        $region23: #{tpu_custom_call.1} parent=19 // pred_region
          %s139 = sand.u32 %s39, 1
          %s140 = scalar_lea.sflag [#allocation3], %s139
          %s141 = sand.u32 %s39, 1
          %s142 = smul.addr %s141, 4
          %s143 = scalar_lea.vmem [#allocation2], %s142
          %s145 = ssub.s32 64, 64
          %146 = vsyncadd %s140, %s145
          %s147 = sadd.s32 %s23, %s22
          %s148 = smul.addr %s147, 64
          %s149 = scalar_lea.hbm %s0, %s148
          %s151 = sshll.u32 %s143, 4
          %s152 = int_to_ptr.vmem [resolvable:$true] %s151
          %154 = dma.hbm_to_vmem [thread:$0]  %s149, 64, %s152, %s140
        $region24: #{tpu_custom_call.1} parent=19 // pred_fallthru
          _
      $region20: #{tpu_custom_call.1} parent=5 // pred_fallthru
        _
      %p155 = scmp.le.s32.totalorder 1, %s15
      %p156 = scmp.lt.s32.totalorder %s15, 3
      %p157 = pnand %p155, %p156
      %p158 = pneg %p157
      // Predicated region
      $region25: #{tpu_custom_call.1} parent=5 // pred_check
        _
      $region26: #{tpu_custom_call.1} parent=5 // pred_check_branch
        %160 = sbr.rel (%p157) target = $region28
      $region27: #{tpu_custom_call.1} parent=5 // pred_region
        %s161 = ssub.s32 %s15, 1
        %s162 = sand.u32 %s42, 1
        %s163 = scalar_lea.sflag [#allocation3], %s162
        %s164 = sand.u32 %s42, 1
        %s165 = smul.addr %s164, 4
        %s166 = scalar_lea.vmem [#allocation2], %s165
        // Predicated region
        $region29: #{tpu_custom_call.1} parent=27 // pred_check
          %p167 = pneg %p55
        $region30: #{tpu_custom_call.1} parent=27 // pred_check_branch
          %169 = sbr.rel (%p167) target = $region32
        $region31: #{tpu_custom_call.1} parent=27 // pred_region
          %170 = dma.done %s163, 64
        $region32: #{tpu_custom_call.1} parent=27 // pred_fallthru
          _
        // Predicated region
        $region33: #{tpu_custom_call.1} parent=27 // pred_check
          %p171 = pneg %p76
        $region34: #{tpu_custom_call.1} parent=27 // pred_check_branch
          %173 = sbr.rel (%p171) target = $region36
        $region35: #{tpu_custom_call.1} parent=27 // pred_region
          %174 = dma.done [#allocation6], 768
        $region36: #{tpu_custom_call.1} parent=27 // pred_fallthru
          _
        %s175 = sand.u32 %s42, 1
        %s176 = scalar_lea.sflag [#allocation3], %s175
        %s177 = sand.u32 %s42, 1
        %s178 = smul.addr %s177, 4
        %s179 = scalar_lea.vmem [#allocation2], %s178
        %p180 = pneg %p55
        %p181 = pneg %p52
        %p182 = pneg %p76
        %p183 = pneg %p73
        %p184 = pneg %p104
        %p185 = pneg %p101
        %s186 = sand.u32 %s91, 1
        %s187 = scalar_lea.sflag [#allocation4], %s186
        %s188 = sand.u32 %s91, 1
        %s189 = smul.addr %s188, 12
        %s190 = scalar_lea.vmem [#allocation7], %s189
        %v192 = vld [vmem:[%s166] sm:$0xf]
        %v193 = vld [vmem:[#allocation5] sm:$0xff]
        %v194 = vld [vmem:[#allocation5 + $0x8] sm:$0xf]
        %v195 = vld [vmem:[#allocation5 + $0xc] sm:$0xff]
        %v196 = vld [vmem:[#allocation5 + $0x14] sm:$0xf]
        %v197 = vld [vmem:[#allocation5 + $0x18] sm:$0xff]
        %v198 = vld [vmem:[#allocation5 + $0x20] sm:$0xf]
        %v199 = vld [vmem:[#allocation5 + $0x24] sm:$0xff]
        %v200 = vld [vmem:[#allocation5 + $0x2c] sm:$0xf]
        %v209 = vunpack.c.l.b16 %v193
        %v210 = vunpack.c.h.b16 %v193
        %v211 = vunpack.c.l.b16 %v194
        %v212 = vunpack.c.l.b16 %v195
        %v213 = vunpack.c.h.b16 %v195
        %v214 = vunpack.c.l.b16 %v196
        %v215 = vunpack.c.l.b16 %v197
        %v216 = vunpack.c.h.b16 %v197
        %v217 = vunpack.c.l.b16 %v198
        %v218 = vunpack.c.l.b16 %v199
        %v219 = vunpack.c.h.b16 %v199
        %v220 = vunpack.c.l.b16 %v200
        %v221 = vpack.c.b16 %v212, %v209
        %v222 = vpack.c.b16 %v213, %v210
        %v223 = vpack.c.b16 %v214, %v211
        %v224 = vpack.c.b16 %v218, %v215
        %v225 = vpack.c.b16 %v219, %v216
        %v226 = vpack.c.b16 %v220, %v217
        %vm233 = vcmask 261120
        %v235 = vsel %vm233, %v192, 0
        %237 = vmatprep.subr.bf16.mxu0 0
        %238 = vmatpush1.bf16.msra.mxu0 0
        %239 = vmatprep.subr.bf16.mxu0 0
        %240 = vmatpush1.bf16.msra.mxu0 0
        %241 = vmatprep.subr.bf16.mxu0 0
        %242 = vmatpush1.bf16.msra.mxu0 0
        %243 = vmatprep.subr.bf16.mxu0 0
        %244 = vmatpush1.bf16.msra.mxu0 0
        %245 = vmatprep.subr.bf16.mxu0 0
        %246 = vmatpush1.bf16.msra.mxu0 0
        %247 = vmatprep.subr.bf16.mxu0 0
        %248 = vmatpush1.bf16.msra.mxu0 0
        %249 = vmatprep.subr.bf16.mxu0 %v225
        %250 = vmatpush1.bf16.msra.mxu0 %v224
        %251 = vmatprep.subr.bf16.mxu0 %v222
        %252 = vmatpush1.bf16.msra.mxu0 %v221
        %253 = vmatprep.subr.bf16.mxu0 0
        %254 = vmatpush2.bf16.msra.mxu0 0
        %255 = vmatprep.subr.bf16.mxu0 0
        %256 = vmatpush2.bf16.msra.mxu0 0
        %257 = vmatprep.subr.bf16.mxu0 0
        %258 = vmatpush2.bf16.msra.mxu0 0
        %259 = vmatprep.subr.bf16.mxu0 0
        %260 = vmatpush2.bf16.msra.mxu0 0
        %261 = vmatprep.subr.bf16.mxu0 0
        %262 = vmatpush2.bf16.msra.mxu0 0
        %263 = vmatprep.subr.bf16.mxu0 0
        %264 = vmatpush2.bf16.msra.mxu0 0
        %265 = vmatprep.subr.bf16.mxu0 0
        %266 = vmatpush2.bf16.msra.mxu0 0
        %267 = vmatprep.subr.bf16.mxu0 0
        %268 = vmatpush2.bf16.msra.mxu0 0
        %269 = vmatprep.mubr.bf16.mxu0 0
        %270 = vmatmul.mubr.bf16.gmra.mxu0 %v235
        %v271 = vpop.f32.mrf.mxu0
        %v272 = vadd.f32 0.0, %v271
        %v273 = vpop.f32.mrf.mxu0
        %v274 = vadd.f32 0.0, %v273
        %v275 = vpop.f32.mrf.mxu0
        %v276 = vpop.f32.mrf.mxu0
        %277 = vdwg.mxu0
        %278 = vmatprep.subr.bf16.mxu0 0
        %279 = vmatpush1.bf16.msra.mxu0 0
        %280 = vmatprep.subr.bf16.mxu0 0
        %281 = vmatpush1.bf16.msra.mxu0 0
        %282 = vmatprep.subr.bf16.mxu0 0
        %283 = vmatpush1.bf16.msra.mxu0 0
        %284 = vmatprep.subr.bf16.mxu0 0
        %285 = vmatpush1.bf16.msra.mxu0 0
        %286 = vmatprep.subr.bf16.mxu0 0
        %287 = vmatpush1.bf16.msra.mxu0 0
        %288 = vmatprep.subr.bf16.mxu0 0
        %289 = vmatpush1.bf16.msra.mxu0 0
        %290 = vmatprep.subr.bf16.mxu0 0
        %291 = vmatpush1.bf16.msra.mxu0 %v226
        %292 = vmatprep.subr.bf16.mxu0 0
        %293 = vmatpush1.bf16.msra.mxu0 %v223
        %294 = vmatprep.subr.bf16.mxu0 0
        %295 = vmatpush2.bf16.msra.mxu0 0
        %296 = vmatprep.subr.bf16.mxu0 0
        %297 = vmatpush2.bf16.msra.mxu0 0
        %298 = vmatprep.subr.bf16.mxu0 0
        %299 = vmatpush2.bf16.msra.mxu0 0
        %300 = vmatprep.subr.bf16.mxu0 0
        %301 = vmatpush2.bf16.msra.mxu0 0
        %302 = vmatprep.subr.bf16.mxu0 0
        %303 = vmatpush2.bf16.msra.mxu0 0
        %304 = vmatprep.subr.bf16.mxu0 0
        %305 = vmatpush2.bf16.msra.mxu0 0
        %306 = vmatprep.subr.bf16.mxu0 0
        %307 = vmatpush2.bf16.msra.mxu0 0
        %308 = vmatprep.subr.bf16.mxu0 0
        %309 = vmatpush2.bf16.msra.mxu0 0
        %310 = vmatprep.mubr.bf16.mxu0 0
        %311 = vmatmul.mubr.bf16.gmra.mxu0 %v235
        %v312 = vpop.f32.mrf.mxu0
        %v313 = vadd.f32 0.0, %v312
        %v314 = vpop.f32.mrf.mxu0
        %v315 = vpop.f32.mrf.mxu0
        %v316 = vpop.f32.mrf.mxu0
        %317 = vdwg.mxu0
        %v318 = vpack.c.bf16 %v272, %v272
        %v319 = vpack.c.bf16 %v274, %v274
        %v320 = vpack.c.bf16 %v313, %v313
        %v324 = vunpack.c.l.b16 %v318
        %v325 = vunpack.c.l.b16 %v319
        %v326 = vunpack.c.l.b16 %v320
        %v327 = vpack.c.b16 %v325, %v324
        %v328 = vpack.c.b16 %v326, %v326
        %331 = vst [vmem:[%s190] sm:$0xff] %v327
        %332 = vst [vmem:[%s190 + $0x8] sm:$0xf] %v328
        %s333 = sand.u32 %s91, 1
        %s334 = scalar_lea.sflag [#allocation4], %s333
        %s335 = sand.u32 %s91, 1
        %s336 = smul.addr %s335, 12
        %s337 = scalar_lea.vmem [#allocation7], %s336
        // Predicated region
        $region37: #{tpu_custom_call.1} parent=27 // pred_check
          %p338 = pneg %p101
        $region38: #{tpu_custom_call.1} parent=27 // pred_check_branch
          %340 = sbr.rel (%p338) target = $region40
        $region39: #{tpu_custom_call.1} parent=27 // pred_region
          %s342 = ssub.s32 192, 192
          %343 = vsyncadd %s334, %s342
          %s344 = smul.addr %s25, 3
          %s345 = smul.addr %s24, 3
          %s346 = sadd.s32 %s344, %s345
          %s347 = smul.addr %s346, 64
          %s348 = scalar_lea.hbm %s2, %s347
          %s350 = sshll.u32 %s337, 4
          %s351 = int_to_ptr.vmem [resolvable:$true] %s350
          %353 = dma.vmem_to_hbm [thread:$0]  %s351, 192, %s348, %s334
        $region40: #{tpu_custom_call.1} parent=27 // pred_fallthru
          _
      $region28: #{tpu_custom_call.1} parent=5 // pred_fallthru
        _
      %p354 = scmp.le.s32.totalorder 2, %s15
      // Predicated region
      $region41: #{tpu_custom_call.1} parent=5 // pred_check
        %p355 = pneg %p354
      $region42: #{tpu_custom_call.1} parent=5 // pred_check_branch
        %357 = sbr.rel (%p355) target = $region44
      $region43: #{tpu_custom_call.1} parent=5 // pred_region
        %s358 = ssub.s32 %s15, 2
        // Predicated region
        $region45: #{tpu_custom_call.1} parent=43 // pred_check
          %p359 = pneg %p107
        $region46: #{tpu_custom_call.1} parent=43 // pred_check_branch
          %361 = sbr.rel (%p359) target = $region48
        $region47: #{tpu_custom_call.1} parent=43 // pred_region
          %s362 = sand.u32 %s92, 1
          %s363 = scalar_lea.sflag [#allocation4], %s362
          %s364 = sand.u32 %s92, 1
          %s365 = smul.addr %s364, 12
          %s366 = scalar_lea.vmem [#allocation7], %s365
          %367 = dma.done %s363, 192
        $region48: #{tpu_custom_call.1} parent=43 // pred_fallthru
          _
      $region44: #{tpu_custom_call.1} parent=5 // pred_fallthru
        _
    $region6: #{tpu_custom_call.1} parent=1 // loop_footer
      %s19 = sadd.s32 1, %s15
    $region7: #{tpu_custom_call.1} parent=1 // loop_footer_branch
      %14 = sbr.rel target = $region3
    $region8: #{tpu_custom_call.1} parent=1 // loop_exit
      _
    %368 = vsyncpa [#allocation3], 1
    %s369 = scalar_lea.sflag [#allocation3], 1
    %370 = vsyncpa %s369, 1
    %371 = vsyncpa [#allocation6], 1
    %372 = vsyncpa [#allocation4], 1
    %s373 = scalar_lea.sflag [#allocation4], 1
    %374 = vsyncpa %s373, 1

</llo_original>
